<compile_context>
chip_gen: v7x
topology: tpu7x:2x2x1
jax: 0.10.0
libtpu: 0.0.40
codegen_flags: <defaults>
</compile_context>

<pallas_src>
import numpy as np
import jax
import jax.numpy as jnp
from jax.experimental import pallas as pl
from jax.experimental.pallas import tpu as pltpu


def _round_up(x, m):
    return ((x + m - 1) // m) * m


def _cdiv(a, b):
    return -(-a // b)


def _sublane_multiple(dtype):
    bits = jnp.dtype(dtype).itemsize * 8
    if bits >= 32:
        return 8
    if bits == 16:
        return 16
    return 32


def _vmem_budget_and_limit():
    """(tile budget bytes, vmem_limit_bytes) sized per TPU generation."""
    kind = ""
    try:
        kind = jax.devices()[0].device_kind.lower()
    except Exception:
        pass
    if ("v5" in kind) or ("v6" in kind):
        limit = 100 << 20   # 128 MiB physical on v5e/v5p/v6e; raise scoped limit
    else:
        limit = 48 << 20    # v7x: 64 MiB physical; unknown -> conservative
    return (limit * 3) // 4, limit


def _choose_tn(hw_pad, cap=2048):
    """Largest multiple of 128 that divides hw_pad and is <= cap."""
    if hw_pad <= cap:
        return hw_pad
    n128 = hw_pad // 128
    best = 128
    for d in range(1, n128 + 1):
        if n128 % d == 0 and d * 128 <= cap:
            best = d * 128
    return best


def _cbfuse_kernel(x0_ref, catx_ref, sel_ref, o_ref):
    # All nearest-upsamples + sums fused into one selection matmul (MXU),
    # accumulated in f32, then a single VPU add with x0.
    up = jnp.dot(catx_ref[...], sel_ref[...], preferred_element_type=jnp.float32)
    o_ref[...] = (x0_ref[...].astype(jnp.float32) + up).astype(o_ref.dtype)


def cbfuse(xs):
    """xs: list of NCHW arrays; xs[0] defines the target spatial size."""
    x0 = xs[0]
    N, C, H, W = map(int, x0.shape)
    B, HW = N * C, H * W
    dtype = x0.dtype

    if len(xs) == 1:            # nothing to fuse
        return x0

    f32, bf16 = jnp.dtype(jnp.float32), jnp.dtype(jnp.bfloat16)
    comp_dtype = jnp.dtype(dtype) if jnp.dtype(dtype) in (f32, bf16) else f32

    hw_ks = [int(x.shape[2]) * int(x.shape[3]) for x in xs[1:]]
    K = sum(hw_ks)
    K_pad = _round_up(K, 128)

    HW_pad = _round_up(HW, 128)
    TN = _choose_tn(HW_pad)
    n_hw = HW_pad // TN

    # ---- VMEM-budget-driven TB (rows of the flattened N*C axis) ----
    budget, vmem_limit = _vmem_budget_and_limit()
    sub = max(_sublane_multiple(dtype), _sublane_multiple(comp_dtype))
    dt_b = jnp.dtype(dtype).itemsize
    cd_b = jnp.dtype(comp_dtype).itemsize
    sel_bufs = 1 if n_hw == 1 else 2
    fixed = sel_bufs * K_pad * TN * cd_b                 # selector residency
    per_row = 4 * TN * dt_b + 2 * K_pad * cd_b           # x0(2) + out(2) + cat_x(2)
    tb_budget = max(sub, (budget - fixed) // per_row)
    TB = min(1024, _round_up(B, sub), (tb_budget // sub) * sub)
    TB = max(sub, TB)
    n_b = _cdiv(B, TB)
    # Guarantee >=2 grid steps when B permits (keeps both v7x TCs busy and lets
    # the pipeline overlap DMA with compute).
    if n_hw * n_b == 1 and _round_up(B, sub) >= 2 * sub:
        TB = _round_up(_cdiv(B, 2), sub)
        n_b = _cdiv(B, TB)
    B_pad = n_b * TB

    # ---- build lane-dense operands ----
    x0_flat = jnp.pad(x0.reshape(B, HW), ((0, B_pad - B), (0, HW_pad - HW)))

    cat_x = jnp.concatenate(
        [x.reshape(B, hw) for x, hw in zip(xs[1:], hw_ks)], axis=1
    ).astype(comp_dtype)
    cat_x = jnp.pad(cat_x, ((0, B_pad - B), (0, K_pad - K)))

    # Stacked one-hot selector (K_pad, HW_pad), built host-side with exact
    # integer nearest-neighbor index math (src = (dst*in)//out).
    sel_np = np.zeros((K_pad, HW_pad), dtype=np.float32)
    cols = np.arange(HW, dtype=np.int64)
    off = 0
    for x in xs[1:]:
        h, w = int(x.shape[2]), int(x.shape[3])
        src_i = (np.arange(H, dtype=np.int64) * h) // H
        src_j = (np.arange(W, dtype=np.int64) * w) // W
        src_flat = (src_i[:, None] * w + src_j[None, :]).reshape(-1)   # (HW,)
        sel_np[off + src_flat, cols] = 1.0
        off += h * w
    cat_sel = jnp.asarray(sel_np, dtype=comp_dtype)

    # ---- specs / grid ----
    if n_hw == 1:
        # Selector block index is constant across the grid -> single-buffer it
        # (halves its VMEM residency, frees room for a bigger TB).
        try:
            sel_spec = pl.BlockSpec((K_pad, TN), lambda j, i: (0, j),
                                    pipeline_mode=pl.Buffered(1))
        except TypeError:       # older BlockSpec without pipeline_mode
            sel_spec = pl.BlockSpec((K_pad, TN), lambda j, i: (0, j))
    else:
        sel_spec = pl.BlockSpec((K_pad, TN), lambda j, i: (0, j))

    in_specs = [
        pl.BlockSpec((TB, TN), lambda j, i: (i, j)),        # x0
        pl.BlockSpec((TB, K_pad), lambda j, i: (i, 0)),     # cat_x (reused across j)
        sel_spec,                                           # stacked selector
    ]

    out = pl.pallas_call(
        _cbfuse_kernel,
        out_shape=jax.ShapeDtypeStruct((B_pad, HW_pad), dtype),
        grid_spec=pltpu.PrefetchScalarGridSpec(
            num_scalar_prefetch=0,
            grid=(n_hw, n_b),                # B blocks inner -> selector DMA'd once per j
            in_specs=in_specs,
            out_specs=pl.BlockSpec((TB, TN), lambda j, i: (i, j)),
        ),
        compiler_params=pltpu.CompilerParams(
            dimension_semantics=("parallel", "parallel"),
            vmem_limit_bytes=vmem_limit,
        ),
    )(x0_flat, cat_x, cat_sel)

    return out[:B, :HW].reshape(N, C, H, W)


def _ref_cbfuse(xs):
    # Pure-JAX reference (integer-ratio nearest upsample via repeat).
    H, W = xs[0].shape[2:]
    acc = xs[0]
    for x in xs[1:]:
        h, w = x.shape[2], x.shape[3]
        up = jnp.repeat(jnp.repeat(x, H // h, axis=2), W // w, axis=3)
        acc = acc + up
    return acc


if __name__ == "__main__":
    key = jax.random.PRNGKey(0)
    k0, k1, k2 = jax.random.split(key, 3)
    # CBFuse has no parameters; inputs are a feature pyramid (NCHW).
    x0 = jax.random.normal(k0, (2, 4, 16, 16), dtype=jnp.float32)
    x1 = jax.random.normal(k1, (2, 4, 8, 8), dtype=jnp.float32)
    x2 = jax.random.normal(k2, (2, 4, 4, 4), dtype=jnp.float32)
    xs = [x0, x1, x2]

    out = jax.block_until_ready(cbfuse(xs))

    ref = _ref_cbfuse(xs)
    assert out.shape == ref.shape and out.dtype == ref.dtype
    assert jnp.allclose(out, ref, atol=1e-5, rtol=1e-5)
    print("KERNEL_OK")
</pallas_src>

<mosaic_0001>
module attributes {stable_mosaic.version = 11 : i64} {
  func.func @_cbfuse_kernel(%arg0: i32, %arg1: i32, %arg2: memref<8x256xf32, #tpu.memory_space<vmem>>, %arg3: memref<8x128xf32, #tpu.memory_space<vmem>>, %arg4: memref<128x256xf32, #tpu.memory_space<vmem>>, %arg5: memref<8x256xf32, #tpu.memory_space<vmem>>) attributes {dimension_semantics = [#tpu.dimension_semantics<parallel>, #tpu.dimension_semantics<parallel>], iteration_bounds = array<i64: 1, 1>, scalar_prefetch = 0 : i64, scratch_operands = 0 : i64, tpu.core_type = #tpu.core_type<tc>, window_params = [{transform_indices = @transform_0, window_bounds = array<i64: 8, 256>}, {transform_indices = @transform_1, window_bounds = array<i64: 8, 128>}, {pipeline_mode = #tpu.pipeline_mode<synchronous>, transform_indices = @transform_2, window_bounds = array<i64: 128, 256>}, {transform_indices = @transform_3, window_bounds = array<i64: 8, 256>}]} {
    %c0 = arith.constant 0 : index
    %c0_0 = arith.constant 0 : index
    %0 = vector.load %arg3[%c0, %c0_0] : memref<8x128xf32, #tpu.memory_space<vmem>>, vector<8x128xf32>
    %c0_1 = arith.constant 0 : index
    %c0_2 = arith.constant 0 : index
    %1 = vector.load %arg4[%c0_1, %c0_2] : memref<128x256xf32, #tpu.memory_space<vmem>>, vector<128x256xf32>
    %cst = arith.constant dense<0.000000e+00> : vector<8x256xf32>
    %2 = tpu.matmul %0, %1, %cst {dimension_numbers = #tpu.dot_dimension_numbers<[1], [0], [0], [1], [0, 0, 1, 1], [], []>} : vector<8x128xf32>, vector<128x256xf32>, vector<8x256xf32> -> vector<8x256xf32>
    %c0_3 = arith.constant 0 : index
    %c0_4 = arith.constant 0 : index
    %3 = vector.load %arg2[%c0_3, %c0_4] : memref<8x256xf32, #tpu.memory_space<vmem>>, vector<8x256xf32>
    %4 = arith.addf %3, %2 : vector<8x256xf32>
    %c0_5 = arith.constant 0 : index
    %c0_6 = arith.constant 0 : index
    %5 = vector.load %arg5[%c0_5, %c0_6] : memref<8x256xf32, #tpu.memory_space<vmem>>, vector<8x256xf32>
    tpu.vector_store %arg5[%c0_5, %c0_6], %4 {strides = array<i32>} : memref<8x256xf32, #tpu.memory_space<vmem>>, vector<8x256xf32>,
    return
  }
  func.func @transform_0(%arg0: i32, %arg1: i32) -> (i32, i32) {
    %c0_i32 = arith.constant 0 : i32
    return %arg1, %arg0 : i32, i32
  }
  func.func @transform_1(%arg0: i32, %arg1: i32) -> (i32, i32) {
    %c0_i32 = arith.constant 0 : i32
    %c0_i32_0 = arith.constant 0 : i32
    return %arg1, %c0_i32 : i32, i32
  }
  func.func @transform_2(%arg0: i32, %arg1: i32) -> (i32, i32) {
    %c0_i32 = arith.constant 0 : i32
    %c0_i32_0 = arith.constant 0 : i32
    return %c0_i32, %arg0 : i32, i32
  }
  func.func @transform_3(%arg0: i32, %arg1: i32) -> (i32, i32) {
    %c0_i32 = arith.constant 0 : i32
    return %arg1, %arg0 : i32, i32
  }
}

</mosaic_0001>

<llo_original>
// kernel: tpu_custom_call.1
$region0: #{tpu_custom_call.1}
  #allocation0 [shape = 'u32[]', space=smem, size = 0x4, offset = 0x4, fixed_abs, tag = 'smem constant byte address 0x4 - core index']
  #allocation1 [shape = 'u32[144,128]{1,0:T(1,128)}', space=vmem, size = 0x12000, scoped, tag = 'internal scratch']
  %s0 = inlined_call_operand.hbm [shape: f32[8,256], index: 0, kind: input, shape index: {}]
  %s1 = inlined_call_operand.hbm [shape: f32[8,128], index: 1, kind: input, shape index: {}]
  %s2 = inlined_call_operand.hbm [shape: f32[128,256], index: 2, kind: input, shape index: {}]
  %s3 = inlined_call_operand.hbm [shape: f32[8,256], index: 3, kind: output, shape index: {}]
  %s4 = sld [smem:[#allocation0]]
  $region34: #{tpu_custom_call.1} parent=0
    _
  %s6 = ssub.s32 1, %s4
  %s7 = scalar_select 0, %s6, %s4
  $region1: #{tpu_custom_call.1} parent=0
    #allocation2 [shape = 'u8[8192]{0}', space=vmem, size = 0x2000, scoped, tag = 'input window, operand 0, single buffered']
    #allocation3 [shape = 's32[1]{0}', space=sflag, size = 0x4, scoped, tag = 'scoped memory for tpu_custom_call.1']
    #allocation4 [shape = 's32[1]{0}', space=sflag, size = 0x4, scoped, tag = 'scoped memory for tpu_custom_call.1']
    #allocation5 [shape = 'u8[4096]{0}', space=vmem, size = 0x1000, scoped, tag = 'input window, operand 1, single buffered']
    #allocation6 [shape = 's32[1]{0}', space=sflag, size = 0x4, scoped, tag = 'scoped memory for tpu_custom_call.1']
    #allocation7 [shape = 'u8[131072]{0}', space=vmem, size = 0x20000, scoped, tag = 'input window, operand 2, single buffered']
    #allocation8 [shape = 'u8[8192]{0}', space=vmem, size = 0x2000, scoped, tag = 'output window, operand 0, single buffered']
    %8 = vsyncpa [#allocation3], 0
    %9 = vsyncpa [#allocation6], 0
    %10 = vsyncpa [#allocation4], 0
    // Predicated region
    $region2: #{tpu_custom_call.1} parent=1 // pred_check
      _
    $region3: #{tpu_custom_call.1} parent=1 // pred_check_branch
      %12 = sbr.rel (0) target = $region5
    $region4: #{tpu_custom_call.1} parent=1 // pred_region
      %s14 = ssub.s32 256, 256
      %15 = vsyncadd [#allocation3], %s14
      %s17 = sshll.u32 [#allocation2], 4
      %s18 = int_to_ptr.vmem [resolvable:$true] %s17
      %20 = dma.hbm_to_vmem [thread:$0]  %s0, 256, %s18, [#allocation3]
    $region5: #{tpu_custom_call.1} parent=1 // pred_fallthru
      _
    // Predicated region
    $region6: #{tpu_custom_call.1} parent=1 // pred_check
      _
    $region7: #{tpu_custom_call.1} parent=1 // pred_check_branch
      %22 = sbr.rel (0) target = $region9
    $region8: #{tpu_custom_call.1} parent=1 // pred_region
      %s24 = ssub.s32 128, 128
      %25 = vsyncadd [#allocation6], %s24
      %s27 = sshll.u32 [#allocation5], 4
      %s28 = int_to_ptr.vmem [resolvable:$true] %s27
      %30 = dma.hbm_to_vmem [thread:$0]  %s1, 128, %s28, [#allocation6]
    $region9: #{tpu_custom_call.1} parent=1 // pred_fallthru
      _
    // Predicated region
    $region10: #{tpu_custom_call.1} parent=1 // pred_check
      _
    $region11: #{tpu_custom_call.1} parent=1 // pred_check_branch
      %32 = sbr.rel (0) target = $region13
    $region12: #{tpu_custom_call.1} parent=1 // pred_region
      %s34 = ssub.s32 4096, 4096
      %35 = vsyncadd [#allocation6], %s34
      %s36 = sshll.u32 [#allocation7], 4
      %s37 = int_to_ptr.vmem [resolvable:$true] %s36
      %42 = dma.hbm_to_vmem [thread:$0]  %s2, 4096, %s37, [#allocation6], 256, 256, 16
    $region13: #{tpu_custom_call.1} parent=1 // pred_fallthru
      _
    // Predicated region
    $region14: #{tpu_custom_call.1} parent=1 // pred_check
      _
    $region15: #{tpu_custom_call.1} parent=1 // pred_check_branch
      %44 = sbr.rel (0) target = $region17
    $region16: #{tpu_custom_call.1} parent=1 // pred_region
      %45 = dma.done [#allocation3], 256
    $region17: #{tpu_custom_call.1} parent=1 // pred_fallthru
      _
    // Predicated region
    $region18: #{tpu_custom_call.1} parent=1 // pred_check
      _
    $region19: #{tpu_custom_call.1} parent=1 // pred_check_branch
      %47 = sbr.rel (0) target = $region21
    $region20: #{tpu_custom_call.1} parent=1 // pred_region
      %48 = dma.done [#allocation6], 128
    $region21: #{tpu_custom_call.1} parent=1 // pred_fallthru
      _
    // Predicated region
    $region22: #{tpu_custom_call.1} parent=1 // pred_check
      _
    $region23: #{tpu_custom_call.1} parent=1 // pred_check_branch
      %50 = sbr.rel (0) target = $region25
    $region24: #{tpu_custom_call.1} parent=1 // pred_region
      %51 = dma.done [#allocation6], 4096
    $region25: #{tpu_custom_call.1} parent=1 // pred_fallthru
      _
    %v52 = vld [vmem:[#allocation5] sm:$0xff]
    %v53 = vld [vmem:[#allocation7] sm:$0xff]
    %v54 = vld [vmem:[#allocation7 + $0x8] sm:$0xff]
    %v55 = vld [vmem:[#allocation7 + $0x10] sm:$0xff]
    %v56 = vld [vmem:[#allocation7 + $0x18] sm:$0xff]
    %v57 = vld [vmem:[#allocation7 + $0x20] sm:$0xff]
    %v58 = vld [vmem:[#allocation7 + $0x28] sm:$0xff]
    %v59 = vld [vmem:[#allocation7 + $0x30] sm:$0xff]
    %v60 = vld [vmem:[#allocation7 + $0x38] sm:$0xff]
    %v61 = vld [vmem:[#allocation7 + $0x40] sm:$0xff]
    %v62 = vld [vmem:[#allocation7 + $0x48] sm:$0xff]
    %v63 = vld [vmem:[#allocation7 + $0x50] sm:$0xff]
    %v64 = vld [vmem:[#allocation7 + $0x58] sm:$0xff]
    %v65 = vld [vmem:[#allocation7 + $0x60] sm:$0xff]
    %v66 = vld [vmem:[#allocation7 + $0x68] sm:$0xff]
    %v67 = vld [vmem:[#allocation7 + $0x70] sm:$0xff]
    %v68 = vld [vmem:[#allocation7 + $0x78] sm:$0xff]
    %v69 = vld [vmem:[#allocation7 + $0x80] sm:$0xff]
    %v70 = vld [vmem:[#allocation7 + $0x88] sm:$0xff]
    %v71 = vld [vmem:[#allocation7 + $0x90] sm:$0xff]
    %v72 = vld [vmem:[#allocation7 + $0x98] sm:$0xff]
    %v73 = vld [vmem:[#allocation7 + $0xa0] sm:$0xff]
    %v74 = vld [vmem:[#allocation7 + $0xa8] sm:$0xff]
    %v75 = vld [vmem:[#allocation7 + $0xb0] sm:$0xff]
    %v76 = vld [vmem:[#allocation7 + $0xb8] sm:$0xff]
    %v77 = vld [vmem:[#allocation7 + $0xc0] sm:$0xff]
    %v78 = vld [vmem:[#allocation7 + $0xc8] sm:$0xff]
    %v79 = vld [vmem:[#allocation7 + $0xd0] sm:$0xff]
    %v80 = vld [vmem:[#allocation7 + $0xd8] sm:$0xff]
    %v81 = vld [vmem:[#allocation7 + $0xe0] sm:$0xff]
    %v82 = vld [vmem:[#allocation7 + $0xe8] sm:$0xff]
    %v83 = vld [vmem:[#allocation7 + $0xf0] sm:$0xff]
    %v84 = vld [vmem:[#allocation7 + $0xf8] sm:$0xff]
    %85 = vmatprep.subr.mxu0 %v54
    %86 = vmatpush1.msra.mxu0 %v53
    %87 = vmatprep.subr.mxu0 %v56
    %88 = vmatpush1.msra.mxu0 %v55
    %89 = vmatprep.subr.mxu0 %v58
    %90 = vmatpush1.msra.mxu0 %v57
    %91 = vmatprep.subr.mxu0 %v60
    %92 = vmatpush1.msra.mxu0 %v59
    %93 = vmatprep.subr.mxu0 %v62
    %94 = vmatpush1.msra.mxu0 %v61
    %95 = vmatprep.subr.mxu0 %v64
    %96 = vmatpush1.msra.mxu0 %v63
    %97 = vmatprep.subr.mxu0 %v66
    %98 = vmatpush1.msra.mxu0 %v65
    %99 = vmatprep.subr.mxu0 %v68
    %100 = vmatpush1.msra.mxu0 %v67
    %101 = vmatprep.subr.mxu0 %v70
    %102 = vmatpush1.msra.mxu0 %v69
    %103 = vmatprep.subr.mxu0 %v72
    %104 = vmatpush1.msra.mxu0 %v71
    %105 = vmatprep.subr.mxu0 %v74
    %106 = vmatpush1.msra.mxu0 %v73
    %107 = vmatprep.subr.mxu0 %v76
    %108 = vmatpush1.msra.mxu0 %v75
    %109 = vmatprep.subr.mxu0 %v78
    %110 = vmatpush1.msra.mxu0 %v77
    %111 = vmatprep.subr.mxu0 %v80
    %112 = vmatpush1.msra.mxu0 %v79
    %113 = vmatprep.subr.mxu0 %v82
    %114 = vmatpush1.msra.mxu0 %v81
    %115 = vmatprep.subr.mxu0 %v84
    %116 = vmatpush1.msra.mxu0 %v83
    %117 = vmatprep.subr.mxu0 0.0
    %118 = vmatpush1.msra.mxu0 0.0
    %119 = vmatprep.subr.mxu0 0.0
    %120 = vmatpush1.msra.mxu0 0.0
    %121 = vmatprep.subr.mxu0 0.0
    %122 = vmatpush1.msra.mxu0 0.0
    %123 = vmatprep.subr.mxu0 0.0
    %124 = vmatpush1.msra.mxu0 0.0
    %125 = vmatprep.subr.mxu0 0.0
    %126 = vmatpush1.msra.mxu0 0.0
    %127 = vmatprep.subr.mxu0 0.0
    %128 = vmatpush1.msra.mxu0 0.0
    %129 = vmatprep.subr.mxu0 0.0
    %130 = vmatpush1.msra.mxu0 0.0
    %131 = vmatprep.subr.mxu0 0.0
    %132 = vmatpush1.msra.mxu0 0.0
    %133 = vmatprep.subr.mxu0 0.0
    %134 = vmatpush1.msra.mxu0 0.0
    %135 = vmatprep.subr.mxu0 0.0
    %136 = vmatpush1.msra.mxu0 0.0
    %137 = vmatprep.subr.mxu0 0.0
    %138 = vmatpush1.msra.mxu0 0.0
    %139 = vmatprep.subr.mxu0 0.0
    %140 = vmatpush1.msra.mxu0 0.0
    %141 = vmatprep.subr.mxu0 0.0
    %142 = vmatpush1.msra.mxu0 0.0
    %143 = vmatprep.subr.mxu0 0.0
    %144 = vmatpush1.msra.mxu0 0.0
    %145 = vmatprep.subr.mxu0 0.0
    %146 = vmatpush1.msra.mxu0 0.0
    %147 = vmatprep.subr.mxu0 0.0
    %148 = vmatpush1.msra.mxu0 0.0
    %149 = vmatprep.mubr.f32.mxu0 0.0
    %150 = vmatmul.mubr.f32.gmra.mrb[0].mxu0 %v52
    %v151 = vpop.f32.mrb[0].mxu0
    %v152 = vadd.f32 0.0, %v151
    %v153 = vpop.f32.mrb[0].mxu0
    %v154 = vadd.f32 0.0, %v153
    %155 = vdwg.mxu0
    %v156 = vld [vmem:[#allocation2] sm:$0xff]
    %v157 = vld [vmem:[#allocation2 + $0x8] sm:$0xff]
    %v158 = vadd.f32 %v156, %v152
    %v159 = vadd.f32 %v157, %v154
    %160 = vst [vmem:[#allocation8] sm:$0xff] %v158
    %161 = vst [vmem:[#allocation8 + $0x8] sm:$0xff] %v159
    // Predicated region
    $region26: #{tpu_custom_call.1} parent=1 // pred_check
      _
    $region27: #{tpu_custom_call.1} parent=1 // pred_check_branch
      %163 = sbr.rel (0) target = $region29
    $region28: #{tpu_custom_call.1} parent=1 // pred_region
      %s165 = ssub.s32 256, 256
      %166 = vsyncadd [#allocation4], %s165
      %s168 = sshll.u32 [#allocation8], 4
      %s169 = int_to_ptr.vmem [resolvable:$true] %s168
      %171 = dma.vmem_to_hbm [thread:$0]  %s169, 256, %s3, [#allocation4]
    $region29: #{tpu_custom_call.1} parent=1 // pred_fallthru
      _
    // Predicated region
    $region30: #{tpu_custom_call.1} parent=1 // pred_check
      _
    $region31: #{tpu_custom_call.1} parent=1 // pred_check_branch
      %173 = sbr.rel (0) target = $region33
    $region32: #{tpu_custom_call.1} parent=1 // pred_region
      %174 = dma.done [#allocation4], 256
    $region33: #{tpu_custom_call.1} parent=1 // pred_fallthru
      _
    %175 = vsyncpa [#allocation3], 1
    %176 = vsyncpa [#allocation6], 1
    %177 = vsyncpa [#allocation4], 1

</llo_original>
